<compile_context>
chip_gen: v6e
topology: v6e:2x2x1
jax: 0.10.0
libtpu: 0.0.40
codegen_flags: <defaults>
</compile_context>

<pallas_src>
import jax
import jax.numpy as jnp
import numpy as np
from jax.experimental import pallas as pl
from jax.experimental.pallas import tpu as pltpu


def _clip_kernel(params_ref, xT_ref, out_ref, cnt_ref):
    """params_ref: SMEM [3]        = (clip_start, clip_end, n_valid)
       xT_ref:     VMEM [C, Npad]  events, transposed, zero-padded
       out_ref:    VMEM [C, Npad]  kept events stably packed into lanes [0, count)
       cnt_ref:    SMEM [1]        number of kept events
    """
    start = params_ref[0]
    end = params_ref[1]
    n_valid = params_ref[2]

    vals = xT_ref[...]                                    # [C, Npad] int32
    n_pad = vals.shape[1]
    lane = jax.lax.broadcasted_iota(jnp.int32, (1, n_pad), 1)

    # Vectorized range test on the timestamp row (read straight from VMEM).
    t = vals[0:1, :]                                      # [1, Npad]
    keep = jnp.where((lane < n_valid) & (t > start) & (t < end), 1, 0)
    cnt_ref[0] = jnp.sum(keep)

    # rem[i] = number of dropped slots strictly before i == left shift needed.
    # Exclusive prefix sum of `drop` via Hillis-Steele scan along lanes.
    drop = 1 - keep
    s = drop
    d = 1
    while d < n_pad:                                      # static: log2(Npad) steps
        s = s + jnp.where(lane >= d, pltpu.roll(s, d, axis=1), 0)
        d *= 2
    rem = s - drop

    # Stable stream compaction toward lane 0: one bit of the shift per pass.
    # Kept slots have strictly increasing positions at every stage, so a
    # rolled-select per pass never overwrites a kept, non-moving element.
    b = 1
    while b < n_pad:                                      # static: log2(Npad) passes
        moving = jnp.where((rem & b) != 0, keep, 0)       # slot sends its element
        recv = jnp.where(lane < n_pad - b,                # slot receives from lane+b
                         pltpu.roll(moving, n_pad - b, axis=1), 0)
        take = recv != 0
        vals = jnp.where(take, pltpu.roll(vals, n_pad - b, axis=1), vals)
        rem = jnp.where(take, pltpu.roll(rem, n_pad - b, axis=1) - b, rem)
        keep = jnp.where(take, 1, keep - moving)
        b *= 2

    # Single dense, lane-wide store; lanes >= count hold unspecified values.
    out_ref[...] = vals


def _round_up(n, m):
    return ((n + m - 1) // m) * m


@jax.jit
def clip_events(x, clip_start, clip_end):
    """Jittable clip.  Returns (packed_T, count) with no host synchronization.

    packed_T: [C, Npad] int32, packed_T[:, :count] are the kept events
              (original order preserved), lanes >= count are unspecified.
    count:    [1] int32 number of kept events.
    """
    n, c = x.shape
    n_pad = max(128, _round_up(n, 128))                   # lane-dense event axis
    xT = jnp.zeros((c, n_pad), dtype=jnp.int32).at[:, :n].set(x.T.astype(jnp.int32))
    params = jnp.stack([
        jnp.asarray(clip_start, jnp.int32),
        jnp.asarray(clip_end, jnp.int32),
        jnp.asarray(n, jnp.int32),
    ])
    # TODO(synk): for very large N, tile the event axis with a grid (512-2048
    # lanes per tile), carry the running pack offset across tiles via scalar
    # prefetch / SMEM, and size tiles for v7x's 64 MiB VMEM with the
    # independent axis marked "parallel"; a single block is fine at demo sizes.
    packed_T, count = pl.pallas_call(
        _clip_kernel,
        out_shape=(
            jax.ShapeDtypeStruct((c, n_pad), jnp.int32),  # packed (padded) events
            jax.ShapeDtypeStruct((1,), jnp.int32),        # number of kept events
        ),
        in_specs=[
            pl.BlockSpec(memory_space=pltpu.MemorySpace.SMEM),   # (start, end, n)
            pl.BlockSpec(memory_space=pltpu.MemorySpace.VMEM),   # events [C, Npad]
        ],
        out_specs=(
            pl.BlockSpec(memory_space=pltpu.MemorySpace.VMEM),
            pl.BlockSpec(memory_space=pltpu.MemorySpace.SMEM),
        ),
    )(params, xT)
    return packed_T, count


def clip(x, clip_start, clip_end):
    """PyTorch-parity convenience returning the [k, C] clipped events.

    Note: materializing the data-dependent shape requires one device->host
    sync for the count; keep `clip_events` in jitted hot paths instead.
    """
    packed_T, count = clip_events(x, clip_start, clip_end)
    k = int(count[0])   # TODO(synk): dynamic output length has no static-shape equivalent
    return packed_T[:, :k].T


if __name__ == "__main__":
    key = jax.random.PRNGKey(0)
    N, C = 64, 4  # N events, fields = [t, p, y, x]
    k_t, k_rest = jax.random.split(key)
    t = jax.random.randint(k_t, (N, 1), 0, 100, dtype=jnp.int32)
    rest = jax.random.randint(k_rest, (N, C - 1), 0, 16, dtype=jnp.int32)
    x = jnp.concatenate([t, rest], axis=1)

    clip_start, clip_end = 20, 80   # Clip(slice(20, 80))

    packed_T, count = jax.block_until_ready(clip_events(x, clip_start, clip_end))

    # Reference: eager boolean indexing, same semantics as the torch forward.
    x_np = np.asarray(x)
    mask = (x_np[:, 0] > clip_start) & (x_np[:, 0] < clip_end)
    ref = x_np[mask]

    k = int(count[0])
    out = np.asarray(packed_T)[:, :k].T
    assert k == ref.shape[0], (k, ref.shape[0])
    assert out.shape == ref.shape, (out.shape, ref.shape)
    assert np.array_equal(out, ref)

    # PyTorch-parity wrapper (does the dynamic slice, one host sync).
    out2 = np.asarray(jax.block_until_ready(clip(x, clip_start, clip_end)))
    assert np.array_equal(out2, ref)

    print("KERNEL_OK")
</pallas_src>

<mosaic_0001>
module attributes {stable_mosaic.version = 11 : i64} {
  func.func @_clip_kernel(%arg0: memref<3xi32, #tpu.memory_space<smem>>, %arg1: memref<4x128xi32, #tpu.memory_space<vmem>>, %arg2: memref<4x128xi32, #tpu.memory_space<vmem>>, %arg3: memref<1xi32, #tpu.memory_space<smem>>) attributes {dimension_semantics = [], scalar_prefetch = 0 : i64, scratch_operands = 0 : i64, tpu.core_type = #tpu.core_type<tc>} {
    %c0 = arith.constant 0 : index
    %0 = memref.load %arg0[%c0] : memref<3xi32, #tpu.memory_space<smem>>
    %c1 = arith.constant 1 : index
    %1 = memref.load %arg0[%c1] : memref<3xi32, #tpu.memory_space<smem>>
    %c2 = arith.constant 2 : index
    %2 = memref.load %arg0[%c2] : memref<3xi32, #tpu.memory_space<smem>>
    %c0_0 = arith.constant 0 : index
    %c0_1 = arith.constant 0 : index
    %3 = vector.load %arg1[%c0_0, %c0_1] : memref<4x128xi32, #tpu.memory_space<vmem>>, vector<4x128xi32>
    %4 = tpu.iota {dimensions = array<i32: 1>} : vector<1x128xi32>
    %5 = vector.extract_strided_slice %3 {offsets = [0, 0], sizes = [1, 128], strides = [1, 1]} : vector<4x128xi32> to vector<1x128xi32>
    %6 = vector.broadcast %2 : i32 to vector<1x128xi32>
    %7 = arith.cmpi slt, %4, %6 : vector<1x128xi32>
    %8 = vector.broadcast %0 : i32 to vector<1x128xi32>
    %9 = arith.cmpi sgt, %5, %8 : vector<1x128xi32>
    %10 = arith.andi %7, %9 : vector<1x128xi1>
    %11 = vector.broadcast %1 : i32 to vector<1x128xi32>
    %12 = arith.cmpi slt, %5, %11 : vector<1x128xi32>
    %13 = arith.andi %10, %12 : vector<1x128xi1>
    %c1_i32 = arith.constant 1 : i32
    %c0_i32 = arith.constant 0 : i32
    %14 = vector.broadcast %c1_i32 : i32 to vector<1x128xi32>
    %15 = vector.broadcast %c0_i32 : i32 to vector<1x128xi32>
    %16 = arith.select %13, %14, %15 : vector<1x128xi1>, vector<1x128xi32>
    %17 = vector.shape_cast %16 : vector<1x128xi32> to vector<1x1x128xi32>
    %cst = arith.constant dense<0> : vector<1xi32>
    %18 = vector.multi_reduction <add>, %17, %cst [1, 2] : vector<1x1x128xi32> to vector<1xi32>
    %19 = vector.shape_cast %18 : vector<1xi32> to vector<1x1x1xi32>
    %20 = vector.extract %19[0, 0, 0] : i32 from vector<1x1x1xi32>
    %c0_2 = arith.constant 0 : index
    %21 = memref.load %arg3[%c0_2] : memref<1xi32, #tpu.memory_space<smem>>
    memref.store %20, %arg3[%c0_2] : memref<1xi32, #tpu.memory_space<smem>>
    %c1_i32_3 = arith.constant 1 : i32
    %22 = vector.broadcast %c1_i32_3 : i32 to vector<1x128xi32>
    %23 = arith.subi %22, %16 : vector<1x128xi32>
    %c1_i32_4 = arith.constant 1 : i32
    %24 = vector.broadcast %c1_i32_4 : i32 to vector<1x128xi32>
    %25 = arith.cmpi sge, %4, %24 : vector<1x128xi32>
    %c1_i32_5 = arith.constant 1 : i32
    %26 = tpu.dynamic_rotate %23 by %c1_i32_5 dim 1 : vector<1x128xi32>, i32 -> vector<1x128xi32>
    %c0_i32_6 = arith.constant 0 : i32
    %27 = vector.broadcast %c0_i32_6 : i32 to vector<1x128xi32>
    %28 = arith.select %25, %26, %27 : vector<1x128xi1>, vector<1x128xi32>
    %29 = arith.addi %23, %28 : vector<1x128xi32>
    %c2_i32 = arith.constant 2 : i32
    %30 = vector.broadcast %c2_i32 : i32 to vector<1x128xi32>
    %31 = arith.cmpi sge, %4, %30 : vector<1x128xi32>
    %c2_i32_7 = arith.constant 2 : i32
    %32 = tpu.dynamic_rotate %29 by %c2_i32_7 dim 1 : vector<1x128xi32>, i32 -> vector<1x128xi32>
    %c0_i32_8 = arith.constant 0 : i32
    %33 = vector.broadcast %c0_i32_8 : i32 to vector<1x128xi32>
    %34 = arith.select %31, %32, %33 : vector<1x128xi1>, vector<1x128xi32>
    %35 = arith.addi %29, %34 : vector<1x128xi32>
    %c4_i32 = arith.constant 4 : i32
    %36 = vector.broadcast %c4_i32 : i32 to vector<1x128xi32>
    %37 = arith.cmpi sge, %4, %36 : vector<1x128xi32>
    %c4_i32_9 = arith.constant 4 : i32
    %38 = tpu.dynamic_rotate %35 by %c4_i32_9 dim 1 : vector<1x128xi32>, i32 -> vector<1x128xi32>
    %c0_i32_10 = arith.constant 0 : i32
    %39 = vector.broadcast %c0_i32_10 : i32 to vector<1x128xi32>
    %40 = arith.select %37, %38, %39 : vector<1x128xi1>, vector<1x128xi32>
    %41 = arith.addi %35, %40 : vector<1x128xi32>
    %c8_i32 = arith.constant 8 : i32
    %42 = vector.broadcast %c8_i32 : i32 to vector<1x128xi32>
    %43 = arith.cmpi sge, %4, %42 : vector<1x128xi32>
    %c8_i32_11 = arith.constant 8 : i32
    %44 = tpu.dynamic_rotate %41 by %c8_i32_11 dim 1 : vector<1x128xi32>, i32 -> vector<1x128xi32>
    %c0_i32_12 = arith.constant 0 : i32
    %45 = vector.broadcast %c0_i32_12 : i32 to vector<1x128xi32>
    %46 = arith.select %43, %44, %45 : vector<1x128xi1>, vector<1x128xi32>
    %47 = arith.addi %41, %46 : vector<1x128xi32>
    %c16_i32 = arith.constant 16 : i32
    %48 = vector.broadcast %c16_i32 : i32 to vector<1x128xi32>
    %49 = arith.cmpi sge, %4, %48 : vector<1x128xi32>
    %c16_i32_13 = arith.constant 16 : i32
    %50 = tpu.dynamic_rotate %47 by %c16_i32_13 dim 1 : vector<1x128xi32>, i32 -> vector<1x128xi32>
    %c0_i32_14 = arith.constant 0 : i32
    %51 = vector.broadcast %c0_i32_14 : i32 to vector<1x128xi32>
    %52 = arith.select %49, %50, %51 : vector<1x128xi1>, vector<1x128xi32>
    %53 = arith.addi %47, %52 : vector<1x128xi32>
    %c32_i32 = arith.constant 32 : i32
    %54 = vector.broadcast %c32_i32 : i32 to vector<1x128xi32>
    %55 = arith.cmpi sge, %4, %54 : vector<1x128xi32>
    %c32_i32_15 = arith.constant 32 : i32
    %56 = tpu.dynamic_rotate %53 by %c32_i32_15 dim 1 : vector<1x128xi32>, i32 -> vector<1x128xi32>
    %c0_i32_16 = arith.constant 0 : i32
    %57 = vector.broadcast %c0_i32_16 : i32 to vector<1x128xi32>
    %58 = arith.select %55, %56, %57 : vector<1x128xi1>, vector<1x128xi32>
    %59 = arith.addi %53, %58 : vector<1x128xi32>
    %c64_i32 = arith.constant 64 : i32
    %60 = vector.broadcast %c64_i32 : i32 to vector<1x128xi32>
    %61 = arith.cmpi sge, %4, %60 : vector<1x128xi32>
    %c64_i32_17 = arith.constant 64 : i32
    %62 = tpu.dynamic_rotate %59 by %c64_i32_17 dim 1 : vector<1x128xi32>, i32 -> vector<1x128xi32>
    %c0_i32_18 = arith.constant 0 : i32
    %63 = vector.broadcast %c0_i32_18 : i32 to vector<1x128xi32>
    %64 = arith.select %61, %62, %63 : vector<1x128xi1>, vector<1x128xi32>
    %65 = arith.addi %59, %64 : vector<1x128xi32>
    %66 = arith.subi %65, %23 : vector<1x128xi32>
    %c1_i32_19 = arith.constant 1 : i32
    %67 = vector.broadcast %c1_i32_19 : i32 to vector<1x128xi32>
    %68 = arith.andi %66, %67 : vector<1x128xi32>
    %c0_i32_20 = arith.constant 0 : i32
    %69 = vector.broadcast %c0_i32_20 : i32 to vector<1x128xi32>
    %70 = arith.cmpi ne, %68, %69 : vector<1x128xi32>
    %c0_i32_21 = arith.constant 0 : i32
    %71 = vector.broadcast %c0_i32_21 : i32 to vector<1x128xi32>
    %72 = arith.select %70, %16, %71 : vector<1x128xi1>, vector<1x128xi32>
    %c127_i32 = arith.constant 127 : i32
    %73 = vector.broadcast %c127_i32 : i32 to vector<1x128xi32>
    %74 = arith.cmpi slt, %4, %73 : vector<1x128xi32>
    %c127_i32_22 = arith.constant 127 : i32
    %75 = tpu.dynamic_rotate %72 by %c127_i32_22 dim 1 : vector<1x128xi32>, i32 -> vector<1x128xi32>
    %c0_i32_23 = arith.constant 0 : i32
    %76 = vector.broadcast %c0_i32_23 : i32 to vector<1x128xi32>
    %77 = arith.select %74, %75, %76 : vector<1x128xi1>, vector<1x128xi32>
    %c0_i32_24 = arith.constant 0 : i32
    %78 = vector.broadcast %c0_i32_24 : i32 to vector<1x128xi32>
    %79 = arith.cmpi ne, %77, %78 : vector<1x128xi32>
    %c127_i32_25 = arith.constant 127 : i32
    %80 = tpu.dynamic_rotate %3 by %c127_i32_25 dim 1 : vector<4x128xi32>, i32 -> vector<4x128xi32>
    %81 = vector.shape_cast %79 : vector<1x128xi1> to vector<1x128xi1>
    %82 = vector.broadcast %81 : vector<1x128xi1> to vector<4x128xi1>
    %83 = arith.select %82, %80, %3 : vector<4x128xi1>, vector<4x128xi32>
    %c127_i32_26 = arith.constant 127 : i32
    %84 = tpu.dynamic_rotate %66 by %c127_i32_26 dim 1 : vector<1x128xi32>, i32 -> vector<1x128xi32>
    %c1_i32_27 = arith.constant 1 : i32
    %85 = vector.broadcast %c1_i32_27 : i32 to vector<1x128xi32>
    %86 = arith.subi %84, %85 : vector<1x128xi32>
    %87 = arith.select %79, %86, %66 : vector<1x128xi1>, vector<1x128xi32>
    %88 = arith.subi %16, %72 : vector<1x128xi32>
    %c1_i32_28 = arith.constant 1 : i32
    %89 = vector.broadcast %c1_i32_28 : i32 to vector<1x128xi32>
    %90 = arith.select %79, %89, %88 : vector<1x128xi1>, vector<1x128xi32>
    %c2_i32_29 = arith.constant 2 : i32
    %91 = vector.broadcast %c2_i32_29 : i32 to vector<1x128xi32>
    %92 = arith.andi %87, %91 : vector<1x128xi32>
    %c0_i32_30 = arith.constant 0 : i32
    %93 = vector.broadcast %c0_i32_30 : i32 to vector<1x128xi32>
    %94 = arith.cmpi ne, %92, %93 : vector<1x128xi32>
    %c0_i32_31 = arith.constant 0 : i32
    %95 = vector.broadcast %c0_i32_31 : i32 to vector<1x128xi32>
    %96 = arith.select %94, %90, %95 : vector<1x128xi1>, vector<1x128xi32>
    %c126_i32 = arith.constant 126 : i32
    %97 = vector.broadcast %c126_i32 : i32 to vector<1x128xi32>
    %98 = arith.cmpi slt, %4, %97 : vector<1x128xi32>
    %c126_i32_32 = arith.constant 126 : i32
    %99 = tpu.dynamic_rotate %96 by %c126_i32_32 dim 1 : vector<1x128xi32>, i32 -> vector<1x128xi32>
    %c0_i32_33 = arith.constant 0 : i32
    %100 = vector.broadcast %c0_i32_33 : i32 to vector<1x128xi32>
    %101 = arith.select %98, %99, %100 : vector<1x128xi1>, vector<1x128xi32>
    %c0_i32_34 = arith.constant 0 : i32
    %102 = vector.broadcast %c0_i32_34 : i32 to vector<1x128xi32>
    %103 = arith.cmpi ne, %101, %102 : vector<1x128xi32>
    %c126_i32_35 = arith.constant 126 : i32
    %104 = tpu.dynamic_rotate %83 by %c126_i32_35 dim 1 : vector<4x128xi32>, i32 -> vector<4x128xi32>
    %105 = vector.shape_cast %103 : vector<1x128xi1> to vector<1x128xi1>
    %106 = vector.broadcast %105 : vector<1x128xi1> to vector<4x128xi1>
    %107 = arith.select %106, %104, %83 : vector<4x128xi1>, vector<4x128xi32>
    %c126_i32_36 = arith.constant 126 : i32
    %108 = tpu.dynamic_rotate %87 by %c126_i32_36 dim 1 : vector<1x128xi32>, i32 -> vector<1x128xi32>
    %c2_i32_37 = arith.constant 2 : i32
    %109 = vector.broadcast %c2_i32_37 : i32 to vector<1x128xi32>
    %110 = arith.subi %108, %109 : vector<1x128xi32>
    %111 = arith.select %103, %110, %87 : vector<1x128xi1>, vector<1x128xi32>
    %112 = arith.subi %90, %96 : vector<1x128xi32>
    %c1_i32_38 = arith.constant 1 : i32
    %113 = vector.broadcast %c1_i32_38 : i32 to vector<1x128xi32>
    %114 = arith.select %103, %113, %112 : vector<1x128xi1>, vector<1x128xi32>
    %c4_i32_39 = arith.constant 4 : i32
    %115 = vector.broadcast %c4_i32_39 : i32 to vector<1x128xi32>
    %116 = arith.andi %111, %115 : vector<1x128xi32>
    %c0_i32_40 = arith.constant 0 : i32
    %117 = vector.broadcast %c0_i32_40 : i32 to vector<1x128xi32>
    %118 = arith.cmpi ne, %116, %117 : vector<1x128xi32>
    %c0_i32_41 = arith.constant 0 : i32
    %119 = vector.broadcast %c0_i32_41 : i32 to vector<1x128xi32>
    %120 = arith.select %118, %114, %119 : vector<1x128xi1>, vector<1x128xi32>
    %c124_i32 = arith.constant 124 : i32
    %121 = vector.broadcast %c124_i32 : i32 to vector<1x128xi32>
    %122 = arith.cmpi slt, %4, %121 : vector<1x128xi32>
    %c124_i32_42 = arith.constant 124 : i32
    %123 = tpu.dynamic_rotate %120 by %c124_i32_42 dim 1 : vector<1x128xi32>, i32 -> vector<1x128xi32>
    %c0_i32_43 = arith.constant 0 : i32
    %124 = vector.broadcast %c0_i32_43 : i32 to vector<1x128xi32>
    %125 = arith.select %122, %123, %124 : vector<1x128xi1>, vector<1x128xi32>
    %c0_i32_44 = arith.constant 0 : i32
    %126 = vector.broadcast %c0_i32_44 : i32 to vector<1x128xi32>
    %127 = arith.cmpi ne, %125, %126 : vector<1x128xi32>
    %c124_i32_45 = arith.constant 124 : i32
    %128 = tpu.dynamic_rotate %107 by %c124_i32_45 dim 1 : vector<4x128xi32>, i32 -> vector<4x128xi32>
    %129 = vector.shape_cast %127 : vector<1x128xi1> to vector<1x128xi1>
    %130 = vector.broadcast %129 : vector<1x128xi1> to vector<4x128xi1>
    %131 = arith.select %130, %128, %107 : vector<4x128xi1>, vector<4x128xi32>
    %c124_i32_46 = arith.constant 124 : i32
    %132 = tpu.dynamic_rotate %111 by %c124_i32_46 dim 1 : vector<1x128xi32>, i32 -> vector<1x128xi32>
    %c4_i32_47 = arith.constant 4 : i32
    %133 = vector.broadcast %c4_i32_47 : i32 to vector<1x128xi32>
    %134 = arith.subi %132, %133 : vector<1x128xi32>
    %135 = arith.select %127, %134, %111 : vector<1x128xi1>, vector<1x128xi32>
    %136 = arith.subi %114, %120 : vector<1x128xi32>
    %c1_i32_48 = arith.constant 1 : i32
    %137 = vector.broadcast %c1_i32_48 : i32 to vector<1x128xi32>
    %138 = arith.select %127, %137, %136 : vector<1x128xi1>, vector<1x128xi32>
    %c8_i32_49 = arith.constant 8 : i32
    %139 = vector.broadcast %c8_i32_49 : i32 to vector<1x128xi32>
    %140 = arith.andi %135, %139 : vector<1x128xi32>
    %c0_i32_50 = arith.constant 0 : i32
    %141 = vector.broadcast %c0_i32_50 : i32 to vector<1x128xi32>
    %142 = arith.cmpi ne, %140, %141 : vector<1x128xi32>
    %c0_i32_51 = arith.constant 0 : i32
    %143 = vector.broadcast %c0_i32_51 : i32 to vector<1x128xi32>
    %144 = arith.select %142, %138, %143 : vector<1x128xi1>, vector<1x128xi32>
    %c120_i32 = arith.constant 120 : i32
    %145 = vector.broadcast %c120_i32 : i32 to vector<1x128xi32>
    %146 = arith.cmpi slt, %4, %145 : vector<1x128xi32>
    %c120_i32_52 = arith.constant 120 : i32
    %147 = tpu.dynamic_rotate %144 by %c120_i32_52 dim 1 : vector<1x128xi32>, i32 -> vector<1x128xi32>
    %c0_i32_53 = arith.constant 0 : i32
    %148 = vector.broadcast %c0_i32_53 : i32 to vector<1x128xi32>
    %149 = arith.select %146, %147, %148 : vector<1x128xi1>, vector<1x128xi32>
    %c0_i32_54 = arith.constant 0 : i32
    %150 = vector.broadcast %c0_i32_54 : i32 to vector<1x128xi32>
    %151 = arith.cmpi ne, %149, %150 : vector<1x128xi32>
    %c120_i32_55 = arith.constant 120 : i32
    %152 = tpu.dynamic_rotate %131 by %c120_i32_55 dim 1 : vector<4x128xi32>, i32 -> vector<4x128xi32>
    %153 = vector.shape_cast %151 : vector<1x128xi1> to vector<1x128xi1>
    %154 = vector.broadcast %153 : vector<1x128xi1> to vector<4x128xi1>
    %155 = arith.select %154, %152, %131 : vector<4x128xi1>, vector<4x128xi32>
    %c120_i32_56 = arith.constant 120 : i32
    %156 = tpu.dynamic_rotate %135 by %c120_i32_56 dim 1 : vector<1x128xi32>, i32 -> vector<1x128xi32>
    %c8_i32_57 = arith.constant 8 : i32
    %157 = vector.broadcast %c8_i32_57 : i32 to vector<1x128xi32>
    %158 = arith.subi %156, %157 : vector<1x128xi32>
    %159 = arith.select %151, %158, %135 : vector<1x128xi1>, vector<1x128xi32>
    %160 = arith.subi %138, %144 : vector<1x128xi32>
    %c1_i32_58 = arith.constant 1 : i32
    %161 = vector.broadcast %c1_i32_58 : i32 to vector<1x128xi32>
    %162 = arith.select %151, %161, %160 : vector<1x128xi1>, vector<1x128xi32>
    %c16_i32_59 = arith.constant 16 : i32
    %163 = vector.broadcast %c16_i32_59 : i32 to vector<1x128xi32>
    %164 = arith.andi %159, %163 : vector<1x128xi32>
    %c0_i32_60 = arith.constant 0 : i32
    %165 = vector.broadcast %c0_i32_60 : i32 to vector<1x128xi32>
    %166 = arith.cmpi ne, %164, %165 : vector<1x128xi32>
    %c0_i32_61 = arith.constant 0 : i32
    %167 = vector.broadcast %c0_i32_61 : i32 to vector<1x128xi32>
    %168 = arith.select %166, %162, %167 : vector<1x128xi1>, vector<1x128xi32>
    %c112_i32 = arith.constant 112 : i32
    %169 = vector.broadcast %c112_i32 : i32 to vector<1x128xi32>
    %170 = arith.cmpi slt, %4, %169 : vector<1x128xi32>
    %c112_i32_62 = arith.constant 112 : i32
    %171 = tpu.dynamic_rotate %168 by %c112_i32_62 dim 1 : vector<1x128xi32>, i32 -> vector<1x128xi32>
    %c0_i32_63 = arith.constant 0 : i32
    %172 = vector.broadcast %c0_i32_63 : i32 to vector<1x128xi32>
    %173 = arith.select %170, %171, %172 : vector<1x128xi1>, vector<1x128xi32>
    %c0_i32_64 = arith.constant 0 : i32
    %174 = vector.broadcast %c0_i32_64 : i32 to vector<1x128xi32>
    %175 = arith.cmpi ne, %173, %174 : vector<1x128xi32>
    %c112_i32_65 = arith.constant 112 : i32
    %176 = tpu.dynamic_rotate %155 by %c112_i32_65 dim 1 : vector<4x128xi32>, i32 -> vector<4x128xi32>
    %177 = vector.shape_cast %175 : vector<1x128xi1> to vector<1x128xi1>
    %178 = vector.broadcast %177 : vector<1x128xi1> to vector<4x128xi1>
    %179 = arith.select %178, %176, %155 : vector<4x128xi1>, vector<4x128xi32>
    %c112_i32_66 = arith.constant 112 : i32
    %180 = tpu.dynamic_rotate %159 by %c112_i32_66 dim 1 : vector<1x128xi32>, i32 -> vector<1x128xi32>
    %c16_i32_67 = arith.constant 16 : i32
    %181 = vector.broadcast %c16_i32_67 : i32 to vector<1x128xi32>
    %182 = arith.subi %180, %181 : vector<1x128xi32>
    %183 = arith.select %175, %182, %159 : vector<1x128xi1>, vector<1x128xi32>
    %184 = arith.subi %162, %168 : vector<1x128xi32>
    %c1_i32_68 = arith.constant 1 : i32
    %185 = vector.broadcast %c1_i32_68 : i32 to vector<1x128xi32>
    %186 = arith.select %175, %185, %184 : vector<1x128xi1>, vector<1x128xi32>
    %c32_i32_69 = arith.constant 32 : i32
    %187 = vector.broadcast %c32_i32_69 : i32 to vector<1x128xi32>
    %188 = arith.andi %183, %187 : vector<1x128xi32>
    %c0_i32_70 = arith.constant 0 : i32
    %189 = vector.broadcast %c0_i32_70 : i32 to vector<1x128xi32>
    %190 = arith.cmpi ne, %188, %189 : vector<1x128xi32>
    %c0_i32_71 = arith.constant 0 : i32
    %191 = vector.broadcast %c0_i32_71 : i32 to vector<1x128xi32>
    %192 = arith.select %190, %186, %191 : vector<1x128xi1>, vector<1x128xi32>
    %c96_i32 = arith.constant 96 : i32
    %193 = vector.broadcast %c96_i32 : i32 to vector<1x128xi32>
    %194 = arith.cmpi slt, %4, %193 : vector<1x128xi32>
    %c96_i32_72 = arith.constant 96 : i32
    %195 = tpu.dynamic_rotate %192 by %c96_i32_72 dim 1 : vector<1x128xi32>, i32 -> vector<1x128xi32>
    %c0_i32_73 = arith.constant 0 : i32
    %196 = vector.broadcast %c0_i32_73 : i32 to vector<1x128xi32>
    %197 = arith.select %194, %195, %196 : vector<1x128xi1>, vector<1x128xi32>
    %c0_i32_74 = arith.constant 0 : i32
    %198 = vector.broadcast %c0_i32_74 : i32 to vector<1x128xi32>
    %199 = arith.cmpi ne, %197, %198 : vector<1x128xi32>
    %c96_i32_75 = arith.constant 96 : i32
    %200 = tpu.dynamic_rotate %179 by %c96_i32_75 dim 1 : vector<4x128xi32>, i32 -> vector<4x128xi32>
    %201 = vector.shape_cast %199 : vector<1x128xi1> to vector<1x128xi1>
    %202 = vector.broadcast %201 : vector<1x128xi1> to vector<4x128xi1>
    %203 = arith.select %202, %200, %179 : vector<4x128xi1>, vector<4x128xi32>
    %c96_i32_76 = arith.constant 96 : i32
    %204 = tpu.dynamic_rotate %183 by %c96_i32_76 dim 1 : vector<1x128xi32>, i32 -> vector<1x128xi32>
    %c32_i32_77 = arith.constant 32 : i32
    %205 = vector.broadcast %c32_i32_77 : i32 to vector<1x128xi32>
    %206 = arith.subi %204, %205 : vector<1x128xi32>
    %207 = arith.select %199, %206, %183 : vector<1x128xi1>, vector<1x128xi32>
    %208 = arith.subi %186, %192 : vector<1x128xi32>
    %c1_i32_78 = arith.constant 1 : i32
    %209 = vector.broadcast %c1_i32_78 : i32 to vector<1x128xi32>
    %210 = arith.select %199, %209, %208 : vector<1x128xi1>, vector<1x128xi32>
    %c64_i32_79 = arith.constant 64 : i32
    %211 = vector.broadcast %c64_i32_79 : i32 to vector<1x128xi32>
    %212 = arith.andi %207, %211 : vector<1x128xi32>
    %c0_i32_80 = arith.constant 0 : i32
    %213 = vector.broadcast %c0_i32_80 : i32 to vector<1x128xi32>
    %214 = arith.cmpi ne, %212, %213 : vector<1x128xi32>
    %c0_i32_81 = arith.constant 0 : i32
    %215 = vector.broadcast %c0_i32_81 : i32 to vector<1x128xi32>
    %216 = arith.select %214, %210, %215 : vector<1x128xi1>, vector<1x128xi32>
    %c64_i32_82 = arith.constant 64 : i32
    %217 = vector.broadcast %c64_i32_82 : i32 to vector<1x128xi32>
    %218 = arith.cmpi slt, %4, %217 : vector<1x128xi32>
    %c64_i32_83 = arith.constant 64 : i32
    %219 = tpu.dynamic_rotate %216 by %c64_i32_83 dim 1 : vector<1x128xi32>, i32 -> vector<1x128xi32>
    %c0_i32_84 = arith.constant 0 : i32
    %220 = vector.broadcast %c0_i32_84 : i32 to vector<1x128xi32>
    %221 = arith.select %218, %219, %220 : vector<1x128xi1>, vector<1x128xi32>
    %c0_i32_85 = arith.constant 0 : i32
    %222 = vector.broadcast %c0_i32_85 : i32 to vector<1x128xi32>
    %223 = arith.cmpi ne, %221, %222 : vector<1x128xi32>
    %c64_i32_86 = arith.constant 64 : i32
    %224 = tpu.dynamic_rotate %203 by %c64_i32_86 dim 1 : vector<4x128xi32>, i32 -> vector<4x128xi32>
    %225 = vector.shape_cast %223 : vector<1x128xi1> to vector<1x128xi1>
    %226 = vector.broadcast %225 : vector<1x128xi1> to vector<4x128xi1>
    %227 = arith.select %226, %224, %203 : vector<4x128xi1>, vector<4x128xi32>
    %c0_87 = arith.constant 0 : index
    %c0_88 = arith.constant 0 : index
    %228 = vector.load %arg2[%c0_87, %c0_88] : memref<4x128xi32, #tpu.memory_space<vmem>>, vector<4x128xi32>
    tpu.vector_store %arg2[%c0_87, %c0_88], %227 {strides = array<i32>} : memref<4x128xi32, #tpu.memory_space<vmem>>, vector<4x128xi32>,
    return
  }
}

</mosaic_0001>

<llo_original>
// kernel: clip_events.1
$region0: #{clip_events.1}
  #allocation0 [shape = 'u32[]', space=smem, size = 0x4, offset = 0x4, fixed_abs, tag = 'smem constant byte address 0x4 - core index']
  #allocation1 [shape = 'u32[144,128]{1,0:T(1,128)}', space=vmem, size = 0x12000, scoped, tag = 'internal scratch']
  %s0 = inlined_call_operand.vmem [shape: s32[3], index: 0, kind: input, shape index: {}]
  %s1 = inlined_call_operand.vmem [shape: s32[4,128], index: 1, kind: input, shape index: {}]
  %s2 = inlined_call_operand.hbm [shape: s32[4,128], index: 2, kind: output, shape index: {0}]
  %s3 = inlined_call_operand.hbm [shape: s32[1], index: 3, kind: output, shape index: {1}]
  %4 = xla_tuple %s2, %s3
  %s5 = sld [smem:[#allocation0]]
  $region30: #{clip_events.1} parent=0
    _
  %s7 = ssub.s32 1, %s5
  %s8 = scalar_select 0, %s7, %s5
  $region1: #{clip_events.1} parent=0
    #allocation2 [shape = 'u8[512]{0}', space=smem, size = 0x200, scoped, tag = 'input window, operand 0, single buffered']
    #allocation3 [shape = 's32[1]{0}', space=sflag, size = 0x4, scoped, tag = 'scoped memory for clip_events.1']
    #allocation4 [shape = 's32[1]{0}', space=sflag, size = 0x4, scoped, tag = 'scoped memory for clip_events.1']
    #allocation5 [shape = 's32[1]{0}', space=sflag, size = 0x4, scoped, tag = 'scoped memory for clip_events.1']
    #allocation6 [shape = 'u8[2048]{0}', space=vmem, size = 0x800, scoped, tag = 'output window, operand 0, single buffered']
    #allocation7 [shape = 'u8[512]{0}', space=smem, size = 0x200, scoped, tag = 'output window, operand 1, single buffered']
    %9 = vsyncpa [#allocation5], 0
    %10 = vsyncpa [#allocation3], 0
    %11 = vsyncpa [#allocation4], 0
    // Predicated region
    $region2: #{clip_events.1} parent=1 // pred_check
      _
    $region3: #{clip_events.1} parent=1 // pred_check_branch
      %13 = sbr.rel (0) target = $region5
    $region4: #{clip_events.1} parent=1 // pred_region
      %s15 = ssub.s32 16, 16
      %16 = vsyncadd [#allocation5], %s15
      %s18 = sshll.u32 %s0, 4
      %s19 = int_to_ptr.vmem [resolvable:$true] %s18
      %21 = dma.vmem_to_smem %s19, 16, [#allocation2], [#allocation5]
    $region5: #{clip_events.1} parent=1 // pred_fallthru
      _
    // Predicated region
    $region6: #{clip_events.1} parent=1 // pred_check
      _
    $region7: #{clip_events.1} parent=1 // pred_check_branch
      %23 = sbr.rel (0) target = $region9
    $region8: #{clip_events.1} parent=1 // pred_region
      _
    $region9: #{clip_events.1} parent=1 // pred_fallthru
      _
    // Predicated region
    $region10: #{clip_events.1} parent=1 // pred_check
      _
    $region11: #{clip_events.1} parent=1 // pred_check_branch
      %25 = sbr.rel (0) target = $region13
    $region12: #{clip_events.1} parent=1 // pred_region
      %26 = dma.done [#allocation5], 16
    $region13: #{clip_events.1} parent=1 // pred_fallthru
      _
    %27 = sfence
    %s28 = sld [smem:[#allocation2]]
    %s29 = sld [smem:[#allocation2 + $0x1]]
    %s30 = sld [smem:[#allocation2 + $0x2]]
    %v31 = vld [vmem:[%s1] sm:$0xf]
    %v32 = vlaneseq
    %v33 = vand.u32 %v32, 127
    %v34 = vstv %s30
    %vm35 = vcmp.lt.s32.totalorder %v33, %v34
    %v36 = vstv %s28
    %vm37 = vcmp.gt.s32.totalorder %v31, %v36
    %vm38 = vmand %vm35, %vm37
    %v39 = vstv %s29
    %vm40 = vcmp.lt.s32.totalorder %v31, %v39
    %vm41 = vmand %vm38, %vm40
    %v42 = vsel %vm41, 1, 0
    %vm43 = vcmask 1040384
    %v44 = vsel %vm43, %v42, 0
    %v45 = vand.u32 %v44, 65535
    %v46 = vshrl.u32 %v44, 16
    %v47 = vcvt.s32.f32 %v45
    %v48 = vcvt.s32.f32 %v46
    %49 = vadd.xlane.f32.xlu0 %v47
    %v50 = vpop.xlane.xlu0 %49
    %51 = vadd.xlane.f32.xlu0 %v48
    %v52 = vpop.xlane.xlu0 %51
    %v53 = vcvt.f32.s32 %v50
    %v54 = vcvt.f32.s32 %v52
    %v55 = vshll.u32 %v54, 16
    %v56 = vadd.s32 %v55, %v53
    %v57 = vrot.slane %v56, 4
    %v58 = vadd.s32 %v56, %v57
    %v59 = vrot.slane %v58, 2
    %v60 = vadd.s32 %v58, %v59
    %v61 = vrot.slane %v60, 1
    %v62 = vadd.s32 %v60, %v61
    %s63 = vtos %v62
    %s64 = scalar_lea.smem [#allocation7], 0
    %65 = sst [smem:[%s64]] %s63
    %v66 = vsub.s32 1, %v42
    %vm67 = vcmp.ge.s32.totalorder %v33, 1
    %68 = vrot.lane.b32.xlu0 %v66, 1
    %v69 = vpop.permute.xlu0 %68
    %v70 = vsel %vm67, %v69, 0
    %v71 = vadd.s32 %v66, %v70
    %vm72 = vcmp.ge.s32.totalorder %v33, 2
    %73 = vrot.lane.b32.xlu0 %v71, 2
    %v74 = vpop.permute.xlu0 %73
    %v75 = vsel %vm72, %v74, 0
    %v76 = vadd.s32 %v71, %v75
    %vm77 = vcmp.ge.s32.totalorder %v33, 4
    %78 = vrot.lane.b32.xlu0 %v76, 4
    %v79 = vpop.permute.xlu0 %78
    %v80 = vsel %vm77, %v79, 0
    %v81 = vadd.s32 %v76, %v80
    %vm82 = vcmp.ge.s32.totalorder %v33, 8
    %83 = vrot.lane.b32.xlu0 %v81, 8
    %v84 = vpop.permute.xlu0 %83
    %v85 = vsel %vm82, %v84, 0
    %v86 = vadd.s32 %v81, %v85
    %vm87 = vcmp.ge.s32.totalorder %v33, 16
    %88 = vrot.lane.b32.xlu0 %v86, 16
    %v89 = vpop.permute.xlu0 %88
    %v90 = vsel %vm87, %v89, 0
    %v91 = vadd.s32 %v86, %v90
    %vm92 = vcmp.ge.s32.totalorder %v33, 32
    %93 = vrot.lane.b32.xlu0 %v91, 32
    %v94 = vpop.permute.xlu0 %93
    %v95 = vsel %vm92, %v94, 0
    %v96 = vadd.s32 %v91, %v95
    %vm97 = vcmp.ge.s32.totalorder %v33, 64
    %98 = vrot.lane.b32.xlu0 %v96, 64
    %v99 = vpop.permute.xlu0 %98
    %v100 = vsel %vm97, %v99, 0
    %v101 = vadd.s32 %v96, %v100
    %v102 = vsub.s32 %v101, %v66
    %v103 = vand.u32 %v102, 1
    %vm104 = vcmp.ne.s32.totalorder %v103, 0
    %v105 = vsel %vm104, %v42, 0
    %vm106 = vcmp.lt.s32.totalorder %v33, 127
    %107 = vrot.lane.b32.xlu0 %v105, 127
    %v108 = vpop.permute.xlu0 %107
    %v109 = vsel %vm106, %v108, 0
    %vm110 = vcmp.ne.s32.totalorder %v109, 0
    %111 = vrot.lane.b32.xlu0 %v31, 127
    %v112 = vpop.permute.xlu0 %111
    %v113 = vsel %vm110, 1, 0
    %v114 = vlaneseq
    %v115 = vshrl.u32 %v114, 7
    %v116 = vsub.s32 0, %v115
    %v117 = vrot.slane %v113, %v116
    %vm118 = vcmp.eq.s32.totalorder %v117, 1
    %v119 = vsel %vm118, %v112, %v31
    %120 = vrot.lane.b32.xlu0 %v102, 127
    %v121 = vpop.permute.xlu0 %120
    %v122 = vsub.s32 %v121, 1
    %v123 = vsel %vm110, %v122, %v102
    %v124 = vsub.s32 %v42, %v105
    %v125 = vsel %vm110, 1, %v124
    %v126 = vand.u32 %v123, 2
    %vm127 = vcmp.ne.s32.totalorder %v126, 0
    %v128 = vsel %vm127, %v125, 0
    %vm129 = vcmp.lt.s32.totalorder %v33, 126
    %130 = vrot.lane.b32.xlu0 %v128, 126
    %v131 = vpop.permute.xlu0 %130
    %v132 = vsel %vm129, %v131, 0
    %vm133 = vcmp.ne.s32.totalorder %v132, 0
    %134 = vrot.lane.b32.xlu0 %v119, 126
    %v135 = vpop.permute.xlu0 %134
    %v136 = vsel %vm133, 1, 0
    %v137 = vlaneseq
    %v138 = vshrl.u32 %v137, 7
    %v139 = vsub.s32 0, %v138
    %v140 = vrot.slane %v136, %v139
    %vm141 = vcmp.eq.s32.totalorder %v140, 1
    %v142 = vsel %vm141, %v135, %v119
    %143 = vrot.lane.b32.xlu0 %v123, 126
    %v144 = vpop.permute.xlu0 %143
    %v145 = vsub.s32 %v144, 2
    %v146 = vsel %vm133, %v145, %v123
    %v147 = vsub.s32 %v125, %v128
    %v148 = vsel %vm133, 1, %v147
    %v149 = vand.u32 %v146, 4
    %vm150 = vcmp.ne.s32.totalorder %v149, 0
    %v151 = vsel %vm150, %v148, 0
    %vm152 = vcmp.lt.s32.totalorder %v33, 124
    %153 = vrot.lane.b32.xlu0 %v151, 124
    %v154 = vpop.permute.xlu0 %153
    %v155 = vsel %vm152, %v154, 0
    %vm156 = vcmp.ne.s32.totalorder %v155, 0
    %157 = vrot.lane.b32.xlu0 %v142, 124
    %v158 = vpop.permute.xlu0 %157
    %v159 = vsel %vm156, 1, 0
    %v160 = vlaneseq
    %v161 = vshrl.u32 %v160, 7
    %v162 = vsub.s32 0, %v161
    %v163 = vrot.slane %v159, %v162
    %vm164 = vcmp.eq.s32.totalorder %v163, 1
    %v165 = vsel %vm164, %v158, %v142
    %166 = vrot.lane.b32.xlu0 %v146, 124
    %v167 = vpop.permute.xlu0 %166
    %v168 = vsub.s32 %v167, 4
    %v169 = vsel %vm156, %v168, %v146
    %v170 = vsub.s32 %v148, %v151
    %v171 = vsel %vm156, 1, %v170
    %v172 = vand.u32 %v169, 8
    %vm173 = vcmp.ne.s32.totalorder %v172, 0
    %v174 = vsel %vm173, %v171, 0
    %vm175 = vcmp.lt.s32.totalorder %v33, 120
    %176 = vrot.lane.b32.xlu0 %v174, 120
    %v177 = vpop.permute.xlu0 %176
    %v178 = vsel %vm175, %v177, 0
    %vm179 = vcmp.ne.s32.totalorder %v178, 0
    %180 = vrot.lane.b32.xlu0 %v165, 120
    %v181 = vpop.permute.xlu0 %180
    %v182 = vsel %vm179, 1, 0
    %v183 = vlaneseq
    %v184 = vshrl.u32 %v183, 7
    %v185 = vsub.s32 0, %v184
    %v186 = vrot.slane %v182, %v185
    %vm187 = vcmp.eq.s32.totalorder %v186, 1
    %v188 = vsel %vm187, %v181, %v165
    %189 = vrot.lane.b32.xlu0 %v169, 120
    %v190 = vpop.permute.xlu0 %189
    %v191 = vsub.s32 %v190, 8
    %v192 = vsel %vm179, %v191, %v169
    %v193 = vsub.s32 %v171, %v174
    %v194 = vsel %vm179, 1, %v193
    %v195 = vand.u32 %v192, 16
    %vm196 = vcmp.ne.s32.totalorder %v195, 0
    %v197 = vsel %vm196, %v194, 0
    %vm198 = vcmp.lt.s32.totalorder %v33, 112
    %199 = vrot.lane.b32.xlu0 %v197, 112
    %v200 = vpop.permute.xlu0 %199
    %v201 = vsel %vm198, %v200, 0
    %vm202 = vcmp.ne.s32.totalorder %v201, 0
    %203 = vrot.lane.b32.xlu0 %v188, 112
    %v204 = vpop.permute.xlu0 %203
    %v205 = vsel %vm202, 1, 0
    %v206 = vlaneseq
    %v207 = vshrl.u32 %v206, 7
    %v208 = vsub.s32 0, %v207
    %v209 = vrot.slane %v205, %v208
    %vm210 = vcmp.eq.s32.totalorder %v209, 1
    %v211 = vsel %vm210, %v204, %v188
    %212 = vrot.lane.b32.xlu0 %v192, 112
    %v213 = vpop.permute.xlu0 %212
    %v214 = vsub.s32 %v213, 16
    %v215 = vsel %vm202, %v214, %v192
    %v216 = vsub.s32 %v194, %v197
    %v217 = vsel %vm202, 1, %v216
    %v218 = vand.u32 %v215, 32
    %vm219 = vcmp.ne.s32.totalorder %v218, 0
    %v220 = vsel %vm219, %v217, 0
    %vm221 = vcmp.lt.s32.totalorder %v33, 96
    %222 = vrot.lane.b32.xlu0 %v220, 96
    %v223 = vpop.permute.xlu0 %222
    %v224 = vsel %vm221, %v223, 0
    %vm225 = vcmp.ne.s32.totalorder %v224, 0
    %226 = vrot.lane.b32.xlu0 %v211, 96
    %v227 = vpop.permute.xlu0 %226
    %v228 = vsel %vm225, 1, 0
    %v229 = vlaneseq
    %v230 = vshrl.u32 %v229, 7
    %v231 = vsub.s32 0, %v230
    %v232 = vrot.slane %v228, %v231
    %vm233 = vcmp.eq.s32.totalorder %v232, 1
    %v234 = vsel %vm233, %v227, %v211
    %235 = vrot.lane.b32.xlu0 %v215, 96
    %v236 = vpop.permute.xlu0 %235
    %v237 = vsub.s32 %v236, 32
    %v238 = vsel %vm225, %v237, %v215
    %v239 = vsub.s32 %v217, %v220
    %v240 = vsel %vm225, 1, %v239
    %v241 = vand.u32 %v238, 64
    %vm242 = vcmp.ne.s32.totalorder %v241, 0
    %v243 = vsel %vm242, %v240, 0
    %vm244 = vcmp.lt.s32.totalorder %v33, 64
    %245 = vrot.lane.b32.xlu0 %v243, 64
    %v246 = vpop.permute.xlu0 %245
    %v247 = vsel %vm244, %v246, 0
    %vm248 = vcmp.ne.s32.totalorder %v247, 0
    %249 = vrot.lane.b32.xlu0 %v234, 64
    %v250 = vpop.permute.xlu0 %249
    %v251 = vsel %vm248, 1, 0
    %v252 = vlaneseq
    %v253 = vshrl.u32 %v252, 7
    %v254 = vsub.s32 0, %v253
    %v255 = vrot.slane %v251, %v254
    %vm256 = vcmp.eq.s32.totalorder %v255, 1
    %v257 = vsel %vm256, %v250, %v234
    %258 = vst [vmem:[#allocation6] sm:$0xf] %v257
    // Predicated region
    $region14: #{clip_events.1} parent=1 // pred_check
      _
    $region15: #{clip_events.1} parent=1 // pred_check_branch
      %260 = sbr.rel (0) target = $region17
    $region16: #{clip_events.1} parent=1 // pred_region
      %s262 = ssub.s32 64, 64
      %263 = vsyncadd [#allocation3], %s262
      %s265 = sshll.u32 [#allocation6], 4
      %s266 = int_to_ptr.vmem [resolvable:$true] %s265
      %268 = dma.vmem_to_hbm [thread:$0]  %s266, 64, %s2, [#allocation3]
    $region17: #{clip_events.1} parent=1 // pred_fallthru
      _
    // Predicated region
    $region18: #{clip_events.1} parent=1 // pred_check
      _
    $region19: #{clip_events.1} parent=1 // pred_check_branch
      %270 = sbr.rel (0) target = $region21
    $region20: #{clip_events.1} parent=1 // pred_region
      %s272 = ssub.s32 16, 16
      %273 = vsyncadd [#allocation4], %s272
      %276 = dma.smem_to_hbm [#allocation7], 16, %s3, [#allocation4]
    $region21: #{clip_events.1} parent=1 // pred_fallthru
      _
    // Predicated region
    $region22: #{clip_events.1} parent=1 // pred_check
      _
    $region23: #{clip_events.1} parent=1 // pred_check_branch
      %278 = sbr.rel (0) target = $region25
    $region24: #{clip_events.1} parent=1 // pred_region
      %279 = dma.done [#allocation3], 64
    $region25: #{clip_events.1} parent=1 // pred_fallthru
      _
    // Predicated region
    $region26: #{clip_events.1} parent=1 // pred_check
      _
    $region27: #{clip_events.1} parent=1 // pred_check_branch
      %281 = sbr.rel (0) target = $region29
    $region28: #{clip_events.1} parent=1 // pred_region
      %282 = dma.done [#allocation4], 16
    $region29: #{clip_events.1} parent=1 // pred_fallthru
      _
    %283 = sfence
    %284 = vsyncpa [#allocation3], 1
    %285 = vsyncpa [#allocation4], 1
    %286 = vsyncpa [#allocation5], 1

</llo_original>
